<compile_context>
chip_gen: v6e
topology: v6e:2x2x1
jax: 0.10.0
libtpu: 0.0.40
codegen_flags: <defaults>
</compile_context>

<pallas_src>
import math

import jax
import jax.numpy as jnp
from jax.experimental import pallas as pl
from jax.experimental.pallas import tpu as pltpu


def _sv_scale_kernel(x_ref, w_ref, o_ref):
    # x_ref: (TILE_R, L), w_ref: (1, L) -> broadcasts over rows, o_ref: (TILE_R, L)
    o_ref[...] = x_ref[...] * w_ref[...]


def _choose_tile_rows(rows, lanes, elem_bytes, target_bytes=2 << 20):
    """Pick a row-tile size ~target_bytes per array, multiple of 8 (or full)."""
    tile = max(1, target_bytes // (lanes * elem_bytes))
    if tile >= rows:
        return rows
    tile = max(8, (tile // 8) * 8)
    return min(tile, rows)


def _pick_lane_width(k, n):
    """Largest lane width L <= 2048 with L % 128 == 0, L % K == 0, N % L == 0."""
    base = (k * 128) // math.gcd(k, 128)  # lcm(K, 128)
    if base > n or n % base != 0 or base > 4096:
        return None
    lane = base
    while lane * 2 <= min(n, 2048) and n % (lane * 2) == 0:
        lane *= 2
    return lane


def _scale_rows(x2d, w_row, tile_rows):
    """y2d[r, c] = x2d[r, c] * w_row[0, c], tiled over rows."""
    rows, lanes = x2d.shape
    elem_bytes = x2d.dtype.itemsize
    n = rows * lanes
    return pl.pallas_call(
        _sv_scale_kernel,
        out_shape=jax.ShapeDtypeStruct((rows, lanes), x2d.dtype),
        grid_spec=pltpu.PrefetchScalarGridSpec(
            num_scalar_prefetch=0,
            grid=(pl.cdiv(rows, tile_rows),),
            in_specs=[
                pl.BlockSpec((tile_rows, lanes), lambda r: (r, 0)),
                pl.BlockSpec((1, lanes), lambda r: (0, 0)),  # weight stays resident
            ],
            out_specs=pl.BlockSpec((tile_rows, lanes), lambda r: (r, 0)),
        ),
        compiler_params=pltpu.CompilerParams(
            dimension_semantics=("parallel",),
            vmem_limit_bytes=32 * 1024 * 1024,
        ),
        cost_estimate=pl.CostEstimate(
            flops=n,
            transcendentals=0,
            bytes_accessed=2 * n * elem_bytes + lanes * elem_bytes,
        ),
    )(x2d, w_row)


def sv_forward(x, weight):
    """x: (B, C, K), weight: (K, 1) -> (B, C, K) with y[:,:,j] = x[:,:,j] * weight[j,0]."""
    B, C, K = x.shape
    dtype = jnp.float32  # module parameter / compute dtype is float32
    x = x.astype(dtype)
    w_row = weight.astype(dtype).reshape(1, K)

    n = B * C * K
    elem_bytes = jnp.dtype(dtype).itemsize

    lane = _pick_lane_width(K, n)
    if lane is not None:
        # Fast path: lane-dense flattened layout, periodic weight row.
        rows = n // lane
        x2d = x.reshape(rows, lane)
        w_tiled = jnp.tile(w_row, (1, lane // K))
        tile_rows = _choose_tile_rows(rows, lane, elem_bytes)
        y2d = _scale_rows(x2d, w_tiled, tile_rows)
        return y2d.reshape(B, C, K)

    # Fallback: keep K on the lane axis (full-dim block), tile over B*C rows.
    rows = B * C
    x2d = x.reshape(rows, K)
    tile_rows = _choose_tile_rows(rows, K, elem_bytes)
    y2d = _scale_rows(x2d, w_row, tile_rows)
    return y2d.reshape(B, C, K)


if __name__ == "__main__":
    # Small shapes consistent with the module: x is (B, C, K=lowrank).
    B, C, lowrank = 2, 8, 32

    key = jax.random.PRNGKey(0)
    kx, kw = jax.random.split(key)
    x = jax.random.normal(kx, (B, C, lowrank), dtype=jnp.float32)

    # nn.Parameter(torch.ones([lowrank, 1])), perturbed deterministically so the
    # per-index scale is non-trivial but reproducible.
    weight = jnp.ones((lowrank, 1), dtype=jnp.float32)
    weight = weight + 0.1 * jax.random.normal(kw, (lowrank, 1), dtype=jnp.float32)

    y = sv_forward(x, weight)
    y = jax.block_until_ready(y)

    # Reference: y[:, :, j] = x[:, :, j] * weight[j, 0]
    y_ref = x * weight[:, 0][None, None, :]
    assert y.shape == x.shape
    assert jnp.allclose(y, y_ref, atol=1e-6, rtol=1e-6)

    print("KERNEL_OK")
</pallas_src>

<mosaic_0001>
module attributes {stable_mosaic.version = 11 : i64} {
  func.func @_sv_scale_kernel(%arg0: i32, %arg1: memref<1x512xf32, #tpu.memory_space<vmem>>, %arg2: memref<1x512xf32, #tpu.memory_space<vmem>>, %arg3: memref<1x512xf32, #tpu.memory_space<vmem>>) attributes {dimension_semantics = [#tpu.dimension_semantics<parallel>], iteration_bounds = array<i64: 1>, scalar_prefetch = 0 : i64, scratch_operands = 0 : i64, tpu.core_type = #tpu.core_type<tc>, window_params = [{transform_indices = @transform_0, window_bounds = array<i64: 1, 512>}, {pipeline_mode = #tpu.pipeline_mode<synchronous>, transform_indices = @transform_1, window_bounds = array<i64: 1, 512>}, {transform_indices = @transform_2, window_bounds = array<i64: 1, 512>}]} {
    %c0 = arith.constant 0 : index
    %c0_0 = arith.constant 0 : index
    %0 = vector.load %arg1[%c0, %c0_0] : memref<1x512xf32, #tpu.memory_space<vmem>>, vector<1x512xf32>
    %c0_1 = arith.constant 0 : index
    %c0_2 = arith.constant 0 : index
    %1 = vector.load %arg2[%c0_1, %c0_2] : memref<1x512xf32, #tpu.memory_space<vmem>>, vector<1x512xf32>
    %2 = arith.mulf %0, %1 : vector<1x512xf32>
    %c0_3 = arith.constant 0 : index
    %c0_4 = arith.constant 0 : index
    %3 = vector.load %arg3[%c0_3, %c0_4] : memref<1x512xf32, #tpu.memory_space<vmem>>, vector<1x512xf32>
    tpu.vector_store %arg3[%c0_3, %c0_4], %2 {strides = array<i32>} : memref<1x512xf32, #tpu.memory_space<vmem>>, vector<1x512xf32>,
    return
  }
  func.func @transform_0(%arg0: i32) -> (i32, i32) {
    %c0_i32 = arith.constant 0 : i32
    %c0_i32_0 = arith.constant 0 : i32
    return %arg0, %c0_i32 : i32, i32
  }
  func.func @transform_1(%arg0: i32) -> (i32, i32) {
    %c0_i32 = arith.constant 0 : i32
    %c0_i32_0 = arith.constant 0 : i32
    %c0_i32_1 = arith.constant 0 : i32
    return %c0_i32, %c0_i32_0 : i32, i32
  }
  func.func @transform_2(%arg0: i32) -> (i32, i32) {
    %c0_i32 = arith.constant 0 : i32
    %c0_i32_0 = arith.constant 0 : i32
    return %arg0, %c0_i32 : i32, i32
  }
}

</mosaic_0001>

<llo_original>
// kernel: tpu_custom_call.1
$region0: #{tpu_custom_call.1}
  #allocation0 [shape = 'u32[]', space=smem, size = 0x4, offset = 0x4, fixed_abs, tag = 'smem constant byte address 0x4 - core index']
  #allocation1 [shape = 'u32[144,128]{1,0:T(1,128)}', space=vmem, size = 0x12000, scoped, tag = 'internal scratch']
  %s0 = inlined_call_operand.hbm [shape: f32[1,512], index: 0, kind: input, shape index: {}]
  %s1 = inlined_call_operand.hbm [shape: f32[1,512], index: 1, kind: input, shape index: {}]
  %s2 = inlined_call_operand.hbm [shape: f32[1,512], index: 2, kind: output, shape index: {}]
  %s3 = sld [smem:[#allocation0]]
  $region26: #{tpu_custom_call.1} parent=0
    _
  %s5 = ssub.s32 1, %s3
  %s6 = scalar_select 0, %s5, %s3
  $region1: #{tpu_custom_call.1} parent=0
    #allocation2 [shape = 'u8[2048]{0}', space=vmem, size = 0x800, scoped, tag = 'input window, operand 0, single buffered']
    #allocation3 [shape = 's32[1]{0}', space=sflag, size = 0x4, scoped, tag = 'scoped memory for tpu_custom_call.1']
    #allocation4 [shape = 's32[1]{0}', space=sflag, size = 0x4, scoped, tag = 'scoped memory for tpu_custom_call.1']
    #allocation5 [shape = 'u8[2048]{0}', space=vmem, size = 0x800, scoped, tag = 'input window, operand 1, single buffered']
    #allocation6 [shape = 's32[1]{0}', space=sflag, size = 0x4, scoped, tag = 'scoped memory for tpu_custom_call.1']
    #allocation7 [shape = 'u8[2048]{0}', space=vmem, size = 0x800, scoped, tag = 'output window, operand 0, single buffered']
    %7 = vsyncpa [#allocation3], 0
    %8 = vsyncpa [#allocation6], 0
    %9 = vsyncpa [#allocation4], 0
    // Predicated region
    $region2: #{tpu_custom_call.1} parent=1 // pred_check
      _
    $region3: #{tpu_custom_call.1} parent=1 // pred_check_branch
      %11 = sbr.rel (0) target = $region5
    $region4: #{tpu_custom_call.1} parent=1 // pred_region
      %s13 = ssub.s32 64, 64
      %14 = vsyncadd [#allocation3], %s13
      %s16 = sshll.u32 [#allocation2], 4
      %s17 = int_to_ptr.vmem [resolvable:$true] %s16
      %19 = dma.hbm_to_vmem [thread:$0]  %s0, 64, %s17, [#allocation3]
    $region5: #{tpu_custom_call.1} parent=1 // pred_fallthru
      _
    // Predicated region
    $region6: #{tpu_custom_call.1} parent=1 // pred_check
      _
    $region7: #{tpu_custom_call.1} parent=1 // pred_check_branch
      %21 = sbr.rel (0) target = $region9
    $region8: #{tpu_custom_call.1} parent=1 // pred_region
      %s23 = ssub.s32 64, 64
      %24 = vsyncadd [#allocation6], %s23
      %s26 = sshll.u32 [#allocation5], 4
      %s27 = int_to_ptr.vmem [resolvable:$true] %s26
      %29 = dma.hbm_to_vmem [thread:$0]  %s1, 64, %s27, [#allocation6]
    $region9: #{tpu_custom_call.1} parent=1 // pred_fallthru
      _
    // Predicated region
    $region10: #{tpu_custom_call.1} parent=1 // pred_check
      _
    $region11: #{tpu_custom_call.1} parent=1 // pred_check_branch
      %31 = sbr.rel (0) target = $region13
    $region12: #{tpu_custom_call.1} parent=1 // pred_region
      %32 = dma.done [#allocation3], 64
    $region13: #{tpu_custom_call.1} parent=1 // pred_fallthru
      _
    // Predicated region
    $region14: #{tpu_custom_call.1} parent=1 // pred_check
      _
    $region15: #{tpu_custom_call.1} parent=1 // pred_check_branch
      %34 = sbr.rel (0) target = $region17
    $region16: #{tpu_custom_call.1} parent=1 // pred_region
      %35 = dma.done [#allocation6], 64
    $region17: #{tpu_custom_call.1} parent=1 // pred_fallthru
      _
    %v36 = vld [vmem:[#allocation2] sm:$0xf]
    %v37 = vld [vmem:[#allocation5] sm:$0xf]
    %v38 = vmul.f32 %v36, %v37
    %v39 = vlaneseq
    %vm40 = vcmp.ge.s32.totalorder %v39, 0
    %vm41 = vcmp.lt.s32.totalorder %v39, 512
    %vm42 = vmand %vm40, %vm41
    %43 = vst.msk [vmem:[#allocation7] sm:$0xf] %vm42, %v38
    // Predicated region
    $region18: #{tpu_custom_call.1} parent=1 // pred_check
      _
    $region19: #{tpu_custom_call.1} parent=1 // pred_check_branch
      %45 = sbr.rel (0) target = $region21
    $region20: #{tpu_custom_call.1} parent=1 // pred_region
      %s47 = ssub.s32 64, 64
      %48 = vsyncadd [#allocation4], %s47
      %s50 = sshll.u32 [#allocation7], 4
      %s51 = int_to_ptr.vmem [resolvable:$true] %s50
      %53 = dma.vmem_to_hbm [thread:$0]  %s51, 64, %s2, [#allocation4]
    $region21: #{tpu_custom_call.1} parent=1 // pred_fallthru
      _
    // Predicated region
    $region22: #{tpu_custom_call.1} parent=1 // pred_check
      _
    $region23: #{tpu_custom_call.1} parent=1 // pred_check_branch
      %55 = sbr.rel (0) target = $region25
    $region24: #{tpu_custom_call.1} parent=1 // pred_region
      %56 = dma.done [#allocation4], 64
    $region25: #{tpu_custom_call.1} parent=1 // pred_fallthru
      _
    %57 = vsyncpa [#allocation3], 1
    %58 = vsyncpa [#allocation6], 1
    %59 = vsyncpa [#allocation4], 1

</llo_original>
